<compile_context>
chip_gen: v6e
topology: v6e:2x2x1
jax: 0.10.0
libtpu: 0.0.40
codegen_flags: <defaults>
</compile_context>

<pallas_src>
import math
import functools

import jax
import jax.numpy as jnp
from jax.experimental import pallas as pl
from jax.experimental.pallas import tpu as pltpu


def _round_up(x: int, m: int) -> int:
    return (x + m - 1) // m * m


# ----------------------------- Pallas kernel -------------------------------
def _patch_proj_kernel(x_ref, w_ref, b_ref, o_ref):
    # x_ref: (TM, Kp) compute dtype; w_ref: (Kp, Ep) compute dtype;
    # b_ref: (1, E) f32; o_ref: (TM, E) out dtype (E may be < Ep).
    # MXU matmul with f32 accumulation, f32 bias add, cast on store.
    prec = (jax.lax.Precision.HIGHEST
            if x_ref.dtype == jnp.float32 else None)
    acc = jnp.dot(x_ref[...], w_ref[...],
                  preferred_element_type=jnp.float32, precision=prec)
    e = o_ref.shape[-1]
    o_ref[...] = (acc[:, :e] + b_ref[...]).astype(o_ref.dtype)


def _choose_tile_m(m: int, k_pad: int, embed_dim: int, in_itemsize: int,
                   out_itemsize: int,
                   budget_bytes: int = 16 * 1024 * 1024) -> int:
    """Largest M-tile (<=1024, multiple of 16) whose double-buffered x/out
    tiles plus the resident weight fit a conservative VMEM budget."""
    e_lanes = _round_up(embed_dim, 128)        # VMEM lane padding
    resident = k_pad * e_lanes * in_itemsize + 8 * 128 * 4
    per_row = 2 * (k_pad * in_itemsize + e_lanes * out_itemsize)
    rows = max(16, (budget_bytes - resident) // max(per_row, 1))
    tm = min(1024, _round_up(m, 16), (rows // 16) * 16)
    return max(16, int(tm))


def _patch_projection(x_flat, w_pad, bias):
    """x_flat: (M, Kp) compute dtype (Kp % 128 == 0),
    w_pad: (Kp, Ep) compute dtype (Ep % 128 == 0),
    bias: (1, E) f32  ->  (M, E) in x_flat.dtype (f32 accumulation inside)."""
    m, k_pad = x_flat.shape
    e_pad = w_pad.shape[1]
    e = bias.shape[1]
    in_itemsize = jnp.dtype(x_flat.dtype).itemsize
    out_dtype = x_flat.dtype
    out_itemsize = jnp.dtype(out_dtype).itemsize

    tm = _choose_tile_m(m, k_pad, e, in_itemsize, out_itemsize)
    grid = (pl.cdiv(m, tm),)   # ragged last tile handled by Pallas masking

    # Scoped VMEM: ~1.5x the double-buffered need, capped generation-aware so
    # this tiny kernel never starves surrounding fusions (v7x: 64 MiB/TC).
    vmem_need = (2 * tm * k_pad * in_itemsize                  # x tiles (2x)
                 + 2 * tm * _round_up(e, 128) * out_itemsize   # out tiles (2x)
                 + k_pad * e_pad * in_itemsize                 # resident weight
                 + 8 * 128 * 4)                                # resident bias
    try:
        vmem_cap = int(pltpu.get_tpu_info().vmem_capacity_bytes)
    except Exception:
        vmem_cap = 64 * 1024 * 1024
    cap = min(vmem_cap // 2, 48 * 1024 * 1024)
    vmem_limit = int(min(max(int(1.5 * vmem_need), 8 * 1024 * 1024), cap))

    cost = pl.CostEstimate(
        flops=2 * m * k_pad * e_pad,
        transcendentals=0,
        bytes_accessed=(m * k_pad * in_itemsize
                        + k_pad * e_pad * in_itemsize
                        + e * 4
                        + m * e * out_itemsize),
    )

    return pl.pallas_call(
        _patch_proj_kernel,
        out_shape=jax.ShapeDtypeStruct((m, e), out_dtype),
        grid=grid,
        in_specs=[
            # TODO(synk): if xprof shows exposed DMA at tile boundaries, add
            # pipeline_mode=pl.Buffered(3) to this spec.
            pl.BlockSpec((tm, k_pad), lambda i: (i, 0)),     # x streams over M
            pl.BlockSpec((k_pad, e_pad), lambda i: (0, 0)),  # weight resident
            pl.BlockSpec((1, e), lambda i: (0, 0)),          # bias resident
        ],
        out_specs=pl.BlockSpec((tm, e), lambda i: (i, 0)),   # true-width store
        compiler_params=pltpu.CompilerParams(
            # TODO(synk): on v7x confirm in xprof that the M axis shards across
            # both TensorCores; switch to pltpu.CORE_PARALLEL if it runs serially.
            dimension_semantics=("parallel",),
            vmem_limit_bytes=vmem_limit,
            # TODO(synk): verify in HLO that the patch transpose + cast + K-pad
            # fuses into the x operand (else it's one extra producer pass).
            allow_input_fusion=[True, False, False],
        ),
        cost_estimate=cost,
    )(x_flat, w_pad, bias)


# ------------------------------ JAX glue ------------------------------------
def image_to_patch_sequence(x, patch_size):
    """x: (B, C, H, W) -> (B, num_patches, C*patch_size**2). Mirrors PyTorch."""
    B, C, H, W = x.shape
    p = patch_size
    x = x.reshape(B, C, H // p, p, W // p, p)
    x = jnp.transpose(x, (0, 2, 4, 1, 3, 5))          # B, H/p, W/p, C, p, p
    x = x.reshape(B, (H // p) * (W // p), C * p * p)  # flatten(1,2)+flatten(2,4)
    return x


@functools.partial(jax.jit, static_argnames=("patch_size", "compute_dtype"))
def _patch_embed_forward(x4, w_pad, bias, *, patch_size, compute_dtype):
    B = x4.shape[0]
    patches = image_to_patch_sequence(x4, patch_size)        # (B, Np, K) f32
    Np, K = patches.shape[1], patches.shape[2]
    k_pad = w_pad.shape[0]
    x_flat = patches.reshape(B * Np, K).astype(compute_dtype)
    if k_pad != K:                                           # lane-dense K
        x_flat = jnp.pad(x_flat, ((0, 0), (0, k_pad - K)))
    out = _patch_projection(x_flat, w_pad, bias)             # (B*Np, E)
    return out.reshape(B, Np, bias.shape[1])


class PatchEmbedding:
    """JAX/Pallas port of the PyTorch PatchEmbedding module.

    compute_dtype=bfloat16 is the production default (MXU-native operands,
    bf16 output, f32 accumulation). compute_dtype=float32 is a validation
    path with near-PyTorch numerics (HIGHEST matmul precision); note exact
    bitwise equality with torch is not guaranteed (accumulation order).
    """
    # TODO(synk): torch's .to(device)/CUDA selection has no Pallas equivalent;
    # JAX device placement is handled by the runtime.

    def __init__(self, image_size, patch_size, embed_dim, in_channels=1,
                 key=None, compute_dtype=jnp.bfloat16):
        assert image_size % patch_size == 0, \
            "Image size must be divisible by patch size."
        self.image_size = image_size
        self.patch_size = patch_size
        self.in_channels = in_channels
        self.embed_dim = embed_dim
        self.compute_dtype = compute_dtype

        in_features = in_channels * patch_size ** 2
        if key is None:
            key = jax.random.PRNGKey(0)
        kw, kb = jax.random.split(key)
        # nn.Linear-style uniform(-1/sqrt(in), 1/sqrt(in)) init.
        bound = 1.0 / math.sqrt(in_features)
        # PyTorch Linear weight is (out, in); store the transpose (in, out).
        self.w_t = jax.random.uniform(
            kw, (in_features, embed_dim), jnp.float32, -bound, bound)
        self.bias = jax.random.uniform(
            kb, (1, embed_dim), jnp.float32, -bound, bound)

        # Kernel-side weight: K and embed dims zero-padded to multiples of 128
        # (lane-dense x rows, full-depth MXU). Output stays at true embed_dim.
        self.k_padded = _round_up(in_features, 128)
        self.embed_dim_padded = _round_up(embed_dim, 128)
        self.w_padded = jnp.pad(
            self.w_t,
            ((0, self.k_padded - in_features),
             (0, self.embed_dim_padded - embed_dim))).astype(compute_dtype)
        # bias stays f32 at true width: added after the f32 accumulation.

    def _project(self, x_4d):
        return _patch_embed_forward(
            x_4d, self.w_padded, self.bias,
            patch_size=self.patch_size, compute_dtype=self.compute_dtype)

    def __call__(self, x):
        if x.ndim == 4:
            return self._project(x)
        elif x.ndim == 5:
            # (N, B, C, H, W): fold users into the batch -> ONE pallas_call,
            # then split back. Matches torch.stack of per-user projections.
            N, B = x.shape[0], x.shape[1]
            out = self._project(x.reshape((N * B,) + x.shape[2:]))
            return out.reshape(N, B, out.shape[1], out.shape[2])
        else:
            raise ValueError("Dimensions of input x is incorrect")


# ------------------------------ reference -----------------------------------
def _ref_forward(module, x):
    def one(x4):
        p = image_to_patch_sequence(x4, module.patch_size)
        return p @ module.w_t + module.bias[0]
    if x.ndim == 4:
        return one(x)
    return jnp.stack([one(x[i]) for i in range(x.shape[0])])


if __name__ == "__main__":
    key = jax.random.PRNGKey(0)
    k_img, k_img5, k_params = jax.random.split(key, 3)

    image_size, patch_size, embed_dim, in_channels = 16, 4, 32, 4

    # f32 compute path: validation (tight tolerance, HIGHEST precision matmul).
    mod_f32 = PatchEmbedding(image_size, patch_size, embed_dim, in_channels,
                             key=k_params, compute_dtype=jnp.float32)
    # bf16 compute path: production default (MXU-native, bf16 output).
    mod_bf16 = PatchEmbedding(image_size, patch_size, embed_dim, in_channels,
                              key=k_params, compute_dtype=jnp.bfloat16)

    # 4-D input: (B, C, H, W)
    x4 = jax.random.normal(k_img, (2, in_channels, image_size, image_size),
                           jnp.float32)
    # 5-D input: (N, B, C, H, W)
    x5 = jax.random.normal(k_img5, (3, 2, in_channels, image_size, image_size),
                           jnp.float32)

    ref4 = _ref_forward(mod_f32, x4)
    ref5 = _ref_forward(mod_f32, x5)

    out4 = mod_f32(x4)
    jax.block_until_ready(out4)
    out5 = mod_f32(x5)
    jax.block_until_ready(out5)
    num_patches = (image_size // patch_size) ** 2
    assert out4.shape == (2, num_patches, embed_dim)
    assert out5.shape == (3, 2, num_patches, embed_dim)
    assert jnp.allclose(out4, ref4, atol=1e-5, rtol=1e-5)
    assert jnp.allclose(out5, ref5, atol=1e-5, rtol=1e-5)

    out4b = mod_bf16(x4)
    jax.block_until_ready(out4b)
    out5b = mod_bf16(x5)
    jax.block_until_ready(out5b)
    assert out4b.shape == out4.shape and out5b.shape == out5.shape
    assert out4b.dtype == jnp.bfloat16 and out5b.dtype == jnp.bfloat16
    assert jnp.allclose(out4b.astype(jnp.float32), ref4, atol=5e-2, rtol=5e-2)
    assert jnp.allclose(out5b.astype(jnp.float32), ref5, atol=5e-2, rtol=5e-2)

    print("KERNEL_OK")
</pallas_src>

<mosaic_0001>
module attributes {stable_mosaic.version = 11 : i64} {
  func.func @_patch_proj_kernel(%arg0: i32, %arg1: memref<32x128xf32, #tpu.memory_space<vmem>>, %arg2: memref<128x128xf32, #tpu.memory_space<vmem>>, %arg3: memref<1x32xf32, #tpu.memory_space<vmem>>, %arg4: memref<32x32xf32, #tpu.memory_space<vmem>>) attributes {dimension_semantics = [#tpu.dimension_semantics<parallel>], iteration_bounds = array<i64: 1>, scalar_prefetch = 0 : i64, scratch_operands = 0 : i64, tpu.core_type = #tpu.core_type<tc>, window_params = [{transform_indices = @transform_0, window_bounds = array<i64: 32, 128>}, {pipeline_mode = #tpu.pipeline_mode<synchronous>, transform_indices = @transform_1, window_bounds = array<i64: 128, 128>}, {pipeline_mode = #tpu.pipeline_mode<synchronous>, transform_indices = @transform_2, window_bounds = array<i64: 1, 32>}, {transform_indices = @transform_3, window_bounds = array<i64: 32, 32>}]} {
    %c0 = arith.constant 0 : index
    %c0_0 = arith.constant 0 : index
    %0 = vector.load %arg1[%c0, %c0_0] : memref<32x128xf32, #tpu.memory_space<vmem>>, vector<32x128xf32>
    %c0_1 = arith.constant 0 : index
    %c0_2 = arith.constant 0 : index
    %1 = vector.load %arg2[%c0_1, %c0_2] : memref<128x128xf32, #tpu.memory_space<vmem>>, vector<128x128xf32>
    %cst = arith.constant dense<0.000000e+00> : vector<32x128xf32>
    %2 = tpu.matmul %0, %1, %cst {dimension_numbers = #tpu.dot_dimension_numbers<[1], [0], [0], [1], [0, 0, 1, 1], [], []>, precision = #tpu.contract_precision<fp32>} : vector<32x128xf32>, vector<128x128xf32>, vector<32x128xf32> -> vector<32x128xf32>
    %3 = vector.extract_strided_slice %2 {offsets = [0, 0], sizes = [32, 32], strides = [1, 1]} : vector<32x128xf32> to vector<32x32xf32>
    %c0_3 = arith.constant 0 : index
    %c0_4 = arith.constant 0 : index
    %4 = vector.load %arg3[%c0_3, %c0_4] : memref<1x32xf32, #tpu.memory_space<vmem>>, vector<1x32xf32>
    %5 = vector.broadcast %4 : vector<1x32xf32> to vector<32x32xf32>
    %6 = arith.addf %3, %5 : vector<32x32xf32>
    %c0_5 = arith.constant 0 : index
    %c0_6 = arith.constant 0 : index
    %7 = vector.load %arg4[%c0_5, %c0_6] : memref<32x32xf32, #tpu.memory_space<vmem>>, vector<32x32xf32>
    tpu.vector_store %arg4[%c0_5, %c0_6], %6 {strides = array<i32>} : memref<32x32xf32, #tpu.memory_space<vmem>>, vector<32x32xf32>,
    return
  }
  func.func @transform_0(%arg0: i32) -> (i32, i32) {
    %c0_i32 = arith.constant 0 : i32
    %c0_i32_0 = arith.constant 0 : i32
    return %arg0, %c0_i32 : i32, i32
  }
  func.func @transform_1(%arg0: i32) -> (i32, i32) {
    %c0_i32 = arith.constant 0 : i32
    %c0_i32_0 = arith.constant 0 : i32
    %c0_i32_1 = arith.constant 0 : i32
    return %c0_i32, %c0_i32_0 : i32, i32
  }
  func.func @transform_2(%arg0: i32) -> (i32, i32) {
    %c0_i32 = arith.constant 0 : i32
    %c0_i32_0 = arith.constant 0 : i32
    %c0_i32_1 = arith.constant 0 : i32
    return %c0_i32, %c0_i32_0 : i32, i32
  }
  func.func @transform_3(%arg0: i32) -> (i32, i32) {
    %c0_i32 = arith.constant 0 : i32
    %c0_i32_0 = arith.constant 0 : i32
    return %arg0, %c0_i32 : i32, i32
  }
}

</mosaic_0001>

<llo_original>
// kernel: _patch_embed_forward.2
$region0: #{_patch_embed_forward.2}
  #allocation0 [shape = 'u32[]', space=smem, size = 0x4, offset = 0x4, fixed_abs, tag = 'smem constant byte address 0x4 - core index']
  #allocation1 [shape = 'u32[144,128]{1,0:T(1,128)}', space=vmem, size = 0x12000, scoped, tag = 'internal scratch']
  #allocation2 [shape = 'u32[2048]{0}', space=vmem, size = 0x2000, scoped, tag = 'scoped memory for _patch_embed_forward.2']
  #allocation3 [shape = 'u32[2048]{0}', space=vmem, size = 0x2000, scoped, tag = 'scoped memory for _patch_embed_forward.2']
  #allocation4 [shape = 'u32[2048]{0}', space=vmem, size = 0x2000, scoped, tag = 'scoped memory for _patch_embed_forward.2']
  #allocation5 [shape = 'u32[2048]{0}', space=vmem, size = 0x2000, scoped, tag = 'scoped memory for _patch_embed_forward.2']
  #allocation6 [shape = 'u32[2048]{0}', space=vmem, size = 0x2000, scoped, tag = 'scoped memory for _patch_embed_forward.2']
  %s0 = inlined_call_operand.vmem [shape: f32[128,128], index: 0, kind: input, shape index: {}]
  %s1 = inlined_call_operand.vmem [shape: f32[1,32], index: 1, kind: input, shape index: {}]
  %s2 = inlined_call_operand.vmem [shape: f32[32,64], index: 2, kind: input, shape index: {}]
  %s3 = inlined_call_operand.<no memory space> [shape: f32[], index: 3, kind: input, shape index: {}]
  %s4 = inlined_call_operand.hbm [shape: f32[32,32], index: 4, kind: output, shape index: {}]
  %s5 = sld [smem:[#allocation0]]
  $region22: #{_patch_embed_forward.2} parent=0
    _
  %s7 = ssub.s32 1, %s5
  %s8 = scalar_select 0, %s7, %s5
  %v9 = vstv %s3
  $region1: #{_patch_embed_forward.2} parent=0
    #allocation7 [shape = 'u8[16384]{0}', space=vmem, size = 0x4000, scoped, tag = 'output window, operand 0, single buffered']
    #allocation8 [shape = 's32[1]{0}', space=sflag, size = 0x4, scoped, tag = 'scoped memory for _patch_embed_forward.2']
    #allocation9 [shape = 'u8[16384]{0}', space=vmem, size = 0x4000, dematerialized = true, scoped, tag = 'FusionAdapter Buffer %fusion.1 = f32[32,128]{1,0:T(8,128)} fusion(%param_2.1, %param_3), kind=kLoop, calls=%fused_computation.2.clone, metadata={op_name="jit(_patch_embed_forward)/jit(_pad)/pad" stack_frame_id=12}']
    %10 = vsyncpa [#allocation8], 0
    // Predicated region
    $region2: #{_patch_embed_forward.2} parent=1 // pred_check
      _
    $region3: #{_patch_embed_forward.2} parent=1 // pred_check_branch
      %12 = sbr.rel (0) target = $region5
    $region4: #{_patch_embed_forward.2} parent=1 // pred_region
      _
    $region5: #{_patch_embed_forward.2} parent=1 // pred_fallthru
      _
    // Predicated region
    $region6: #{_patch_embed_forward.2} parent=1 // pred_check
      _
    $region7: #{_patch_embed_forward.2} parent=1 // pred_check_branch
      %14 = sbr.rel (0) target = $region9
    $region8: #{_patch_embed_forward.2} parent=1 // pred_region
      _
    $region9: #{_patch_embed_forward.2} parent=1 // pred_fallthru
      _
    // Predicated region
    $region10: #{_patch_embed_forward.2} parent=1 // pred_check
      _
    $region11: #{_patch_embed_forward.2} parent=1 // pred_check_branch
      %16 = sbr.rel (0) target = $region13
    $region12: #{_patch_embed_forward.2} parent=1 // pred_region
      _
    $region13: #{_patch_embed_forward.2} parent=1 // pred_fallthru
      _
    %v17 = vld [vmem:[%s2] sm:$0xff]
    %v18 = vlaneseq
    %v19 = vand.u32 %v18, 127
    %vm21 = vcmp.lt.s32.totalorder %v19, 64
    %v22 = vsel %vm21, %v17, %v9
    %s24 = ssub.s32 256, 1
    %25 = vst [vmem:[#allocation9] sm:%s24] %v22
    %s26 = scalar_lea.vmem %s2, 8
    %v27 = vld [vmem:[%s26] sm:$0xff]
    %v28 = vlaneseq
    %v29 = vand.u32 %v28, 127
    %vm31 = vcmp.lt.s32.totalorder %v29, 64
    %v32 = vsel %vm31, %v27, %v9
    %s33 = scalar_lea.vmem [#allocation9], 8
    %s35 = ssub.s32 256, 1
    %36 = vst [vmem:[%s33] sm:%s35] %v32
    %s37 = scalar_lea.vmem %s2, 16
    %v38 = vld [vmem:[%s37] sm:$0xff]
    %v39 = vlaneseq
    %v40 = vand.u32 %v39, 127
    %vm42 = vcmp.lt.s32.totalorder %v40, 64
    %v43 = vsel %vm42, %v38, %v9
    %s44 = scalar_lea.vmem [#allocation9], 16
    %s46 = ssub.s32 256, 1
    %47 = vst [vmem:[%s44] sm:%s46] %v43
    %s48 = scalar_lea.vmem %s2, 24
    %v49 = vld [vmem:[%s48] sm:$0xff]
    %v50 = vlaneseq
    %v51 = vand.u32 %v50, 127
    %vm53 = vcmp.lt.s32.totalorder %v51, 64
    %v54 = vsel %vm53, %v49, %v9
    %s55 = scalar_lea.vmem [#allocation9], 24
    %s57 = ssub.s32 256, 1
    %58 = vst [vmem:[%s55] sm:%s57] %v54
    %v59 = vld [vmem:[#allocation9] sm:$0xff]
    %v60 = vld [vmem:[#allocation9 + $0x8] sm:$0xff]
    %v61 = vld [vmem:[#allocation9 + $0x10] sm:$0xff]
    %v62 = vld [vmem:[#allocation9 + $0x18] sm:$0xff]
    %v63 = vld [vmem:[%s0] sm:$0xff]
    %v64 = vld [vmem:[%s0 + $0x8] sm:$0xff]
    %v65 = vld [vmem:[%s0 + $0x10] sm:$0xff]
    %v66 = vld [vmem:[%s0 + $0x18] sm:$0xff]
    %v67 = vld [vmem:[%s0 + $0x20] sm:$0xff]
    %v68 = vld [vmem:[%s0 + $0x28] sm:$0xff]
    %v69 = vld [vmem:[%s0 + $0x30] sm:$0xff]
    %v70 = vld [vmem:[%s0 + $0x38] sm:$0xff]
    %v71 = vld [vmem:[%s0 + $0x40] sm:$0xff]
    %v72 = vld [vmem:[%s0 + $0x48] sm:$0xff]
    %v73 = vld [vmem:[%s0 + $0x50] sm:$0xff]
    %v74 = vld [vmem:[%s0 + $0x58] sm:$0xff]
    %v75 = vld [vmem:[%s0 + $0x60] sm:$0xff]
    %v76 = vld [vmem:[%s0 + $0x68] sm:$0xff]
    %v77 = vld [vmem:[%s0 + $0x70] sm:$0xff]
    %v78 = vld [vmem:[%s0 + $0x78] sm:$0xff]
    %79 = vmatprep.subr.mxu0 0.0
    %v80 = vand.u32 %v78, 4294901760
    %81 = vmatpush1.msra.mxu0 %v80
    %82 = vmatprep.subr.mxu0 0.0
    %v83 = vand.u32 %v77, 4294901760
    %84 = vmatpush1.msra.mxu0 %v83
    %85 = vmatprep.subr.mxu0 0.0
    %v86 = vand.u32 %v76, 4294901760
    %87 = vmatpush1.msra.mxu0 %v86
    %88 = vmatprep.subr.mxu0 0.0
    %v89 = vand.u32 %v75, 4294901760
    %90 = vmatpush1.msra.mxu0 %v89
    %91 = vmatprep.subr.mxu0 0.0
    %v92 = vand.u32 %v74, 4294901760
    %93 = vmatpush1.msra.mxu0 %v92
    %94 = vmatprep.subr.mxu0 0.0
    %v95 = vand.u32 %v73, 4294901760
    %96 = vmatpush1.msra.mxu0 %v95
    %97 = vmatprep.subr.mxu0 0.0
    %v98 = vand.u32 %v72, 4294901760
    %99 = vmatpush1.msra.mxu0 %v98
    %100 = vmatprep.subr.mxu0 0.0
    %v101 = vand.u32 %v71, 4294901760
    %102 = vmatpush1.msra.mxu0 %v101
    %103 = vmatprep.subr.mxu0 0.0
    %v104 = vand.u32 %v70, 4294901760
    %105 = vmatpush1.msra.mxu0 %v104
    %106 = vmatprep.subr.mxu0 0.0
    %v107 = vand.u32 %v69, 4294901760
    %108 = vmatpush1.msra.mxu0 %v107
    %109 = vmatprep.subr.mxu0 0.0
    %v110 = vand.u32 %v68, 4294901760
    %111 = vmatpush1.msra.mxu0 %v110
    %112 = vmatprep.subr.mxu0 0.0
    %v113 = vand.u32 %v67, 4294901760
    %114 = vmatpush1.msra.mxu0 %v113
    %115 = vmatprep.subr.mxu0 0.0
    %v116 = vand.u32 %v66, 4294901760
    %117 = vmatpush1.msra.mxu0 %v116
    %118 = vmatprep.subr.mxu0 0.0
    %v119 = vand.u32 %v65, 4294901760
    %120 = vmatpush1.msra.mxu0 %v119
    %121 = vmatprep.subr.mxu0 0.0
    %v122 = vand.u32 %v64, 4294901760
    %123 = vmatpush1.msra.mxu0 %v122
    %124 = vmatprep.subr.mxu0 0.0
    %v125 = vand.u32 %v63, 4294901760
    %126 = vmatpush1.msra.mxu0 %v125
    %127 = vmatprep.subr.mxu0 0.0
    %128 = vmatpush2.msra.mxu0 0.0
    %129 = vmatprep.subr.mxu0 0.0
    %130 = vmatpush2.msra.mxu0 0.0
    %131 = vmatprep.subr.mxu0 0.0
    %132 = vmatpush2.msra.mxu0 0.0
    %133 = vmatprep.subr.mxu0 0.0
    %134 = vmatpush2.msra.mxu0 0.0
    %135 = vmatprep.subr.mxu0 0.0
    %136 = vmatpush2.msra.mxu0 0.0
    %137 = vmatprep.subr.mxu0 0.0
    %138 = vmatpush2.msra.mxu0 0.0
    %139 = vmatprep.subr.mxu0 0.0
    %140 = vmatpush2.msra.mxu0 0.0
    %141 = vmatprep.subr.mxu0 0.0
    %142 = vmatpush2.msra.mxu0 0.0
    %143 = vmatprep.subr.mxu0 0.0
    %144 = vmatpush2.msra.mxu0 0.0
    %145 = vmatprep.subr.mxu0 0.0
    %146 = vmatpush2.msra.mxu0 0.0
    %147 = vmatprep.subr.mxu0 0.0
    %148 = vmatpush2.msra.mxu0 0.0
    %149 = vmatprep.subr.mxu0 0.0
    %150 = vmatpush2.msra.mxu0 0.0
    %151 = vmatprep.subr.mxu0 0.0
    %152 = vmatpush2.msra.mxu0 0.0
    %153 = vmatprep.subr.mxu0 0.0
    %154 = vmatpush2.msra.mxu0 0.0
    %155 = vmatprep.subr.mxu0 0.0
    %156 = vmatpush2.msra.mxu0 0.0
    %157 = vmatprep.subr.mxu0 0.0
    %158 = vmatpush2.msra.mxu0 0.0
    %159 = vmatprep.mubr.f32.mxu0 0.0
    %v160 = vand.u32 %v59, 4294901760
    %v161 = vsub.f32 %v59, %v160
    %v162 = vand.u32 %v161, 4294901760
    %v163 = vsub.f32 %v161, %v162
    %v164 = vand.u32 %v163, 4294901760
    %165 = vmatmul.mubr.f32.gmra.mxu0 %v164
    %v166 = vpop.f32.mrf.mxu0
    %v167 = vadd.f32 0.0, %v166
    %v168 = vpop.f32.mrf.mxu0
    %169 = vmatprep.mubr.f32.mxu0 0.0
    %v170 = vand.u32 %v60, 4294901760
    %v171 = vsub.f32 %v60, %v170
    %v172 = vand.u32 %v171, 4294901760
    %v173 = vsub.f32 %v171, %v172
    %v174 = vand.u32 %v173, 4294901760
    %175 = vmatmul.mubr.f32.gmra.mxu0 %v174
    %v176 = vpop.f32.mrf.mxu0
    %v177 = vadd.f32 0.0, %v176
    %v178 = vpop.f32.mrf.mxu0
    %179 = vmatprep.mubr.f32.mxu0 0.0
    %v180 = vand.u32 %v61, 4294901760
    %v181 = vsub.f32 %v61, %v180
    %v182 = vand.u32 %v181, 4294901760
    %v183 = vsub.f32 %v181, %v182
    %v184 = vand.u32 %v183, 4294901760
    %185 = vmatmul.mubr.f32.gmra.mxu0 %v184
    %v186 = vpop.f32.mrf.mxu0
    %v187 = vadd.f32 0.0, %v186
    %v188 = vpop.f32.mrf.mxu0
    %189 = vmatprep.mubr.f32.mxu0 0.0
    %v190 = vand.u32 %v62, 4294901760
    %v191 = vsub.f32 %v62, %v190
    %v192 = vand.u32 %v191, 4294901760
    %v193 = vsub.f32 %v191, %v192
    %v194 = vand.u32 %v193, 4294901760
    %195 = vmatmul.mubr.f32.gmra.mxu0 %v194
    %v196 = vpop.f32.mrf.mxu0
    %v197 = vadd.f32 0.0, %v196
    %v198 = vpop.f32.mrf.mxu0
    %199 = vdwg.mxu0
    %200 = vmatprep.subr.mxu0 0.0
    %v201 = vand.u32 %v78, 4294901760
    %v202 = vsub.f32 %v78, %v201
    %v203 = vand.u32 %v202, 4294901760
    %v204 = vsub.f32 %v202, %v203
    %v205 = vand.u32 %v204, 4294901760
    %206 = vmatpush1.msra.mxu0 %v205
    %207 = vmatprep.subr.mxu0 0.0
    %v208 = vand.u32 %v77, 4294901760
    %v209 = vsub.f32 %v77, %v208
    %v210 = vand.u32 %v209, 4294901760
    %v211 = vsub.f32 %v209, %v210
    %v212 = vand.u32 %v211, 4294901760
    %213 = vmatpush1.msra.mxu0 %v212
    %214 = vmatprep.subr.mxu0 0.0
    %v215 = vand.u32 %v76, 4294901760
    %v216 = vsub.f32 %v76, %v215
    %v217 = vand.u32 %v216, 4294901760
    %v218 = vsub.f32 %v216, %v217
    %v219 = vand.u32 %v218, 4294901760
    %220 = vmatpush1.msra.mxu0 %v219
    %221 = vmatprep.subr.mxu0 0.0
    %v222 = vand.u32 %v75, 4294901760
    %v223 = vsub.f32 %v75, %v222
    %v224 = vand.u32 %v223, 4294901760
    %v225 = vsub.f32 %v223, %v224
    %v226 = vand.u32 %v225, 4294901760
    %227 = vmatpush1.msra.mxu0 %v226
    %228 = vmatprep.subr.mxu0 0.0
    %v229 = vand.u32 %v74, 4294901760
    %v230 = vsub.f32 %v74, %v229
    %v231 = vand.u32 %v230, 4294901760
    %v232 = vsub.f32 %v230, %v231
    %v233 = vand.u32 %v232, 4294901760
    %234 = vmatpush1.msra.mxu0 %v233
    %235 = vmatprep.subr.mxu0 0.0
    %v236 = vand.u32 %v73, 4294901760
    %v237 = vsub.f32 %v73, %v236
    %v238 = vand.u32 %v237, 4294901760
    %v239 = vsub.f32 %v237, %v238
    %v240 = vand.u32 %v239, 4294901760
    %241 = vmatpush1.msra.mxu0 %v240
    %242 = vmatprep.subr.mxu0 0.0
    %v243 = vand.u32 %v72, 4294901760
    %v244 = vsub.f32 %v72, %v243
    %v245 = vand.u32 %v244, 4294901760
    %v246 = vsub.f32 %v244, %v245
    %v247 = vand.u32 %v246, 4294901760
    %248 = vmatpush1.msra.mxu0 %v247
    %249 = vmatprep.subr.mxu0 0.0
    %v250 = vand.u32 %v71, 4294901760
    %v251 = vsub.f32 %v71, %v250
    %v252 = vand.u32 %v251, 4294901760
    %v253 = vsub.f32 %v251, %v252
    %v254 = vand.u32 %v253, 4294901760
    %255 = vmatpush1.msra.mxu0 %v254
    %256 = vmatprep.subr.mxu0 0.0
    %v257 = vand.u32 %v70, 4294901760
    %v258 = vsub.f32 %v70, %v257
    %v259 = vand.u32 %v258, 4294901760
    %v260 = vsub.f32 %v258, %v259
    %v261 = vand.u32 %v260, 4294901760
    %262 = vmatpush1.msra.mxu0 %v261
    %263 = vmatprep.subr.mxu0 0.0
    %v264 = vand.u32 %v69, 4294901760
    %v265 = vsub.f32 %v69, %v264
    %v266 = vand.u32 %v265, 4294901760
    %v267 = vsub.f32 %v265, %v266
    %v268 = vand.u32 %v267, 4294901760
    %269 = vmatpush1.msra.mxu0 %v268
    %270 = vmatprep.subr.mxu0 0.0
    %v271 = vand.u32 %v68, 4294901760
    %v272 = vsub.f32 %v68, %v271
    %v273 = vand.u32 %v272, 4294901760
    %v274 = vsub.f32 %v272, %v273
    %v275 = vand.u32 %v274, 4294901760
    %276 = vmatpush1.msra.mxu0 %v275
    %277 = vmatprep.subr.mxu0 0.0
    %v278 = vand.u32 %v67, 4294901760
    %v279 = vsub.f32 %v67, %v278
    %v280 = vand.u32 %v279, 4294901760
    %v281 = vsub.f32 %v279, %v280
    %v282 = vand.u32 %v281, 4294901760
    %283 = vmatpush1.msra.mxu0 %v282
    %284 = vmatprep.subr.mxu0 0.0
    %v285 = vand.u32 %v66, 4294901760
    %v286 = vsub.f32 %v66, %v285
    %v287 = vand.u32 %v286, 4294901760
    %v288 = vsub.f32 %v286, %v287
    %v289 = vand.u32 %v288, 4294901760
    %290 = vmatpush1.msra.mxu0 %v289
    %291 = vmatprep.subr.mxu0 0.0
    %v292 = vand.u32 %v65, 4294901760
    %v293 = vsub.f32 %v65, %v292
    %v294 = vand.u32 %v293, 4294901760
    %v295 = vsub.f32 %v293, %v294
    %v296 = vand.u32 %v295, 4294901760
    %297 = vmatpush1.msra.mxu0 %v296
    %298 = vmatprep.subr.mxu0 0.0
    %v299 = vand.u32 %v64, 4294901760
    %v300 = vsub.f32 %v64, %v299
    %v301 = vand.u32 %v300, 4294901760
    %v302 = vsub.f32 %v300, %v301
    %v303 = vand.u32 %v302, 4294901760
    %304 = vmatpush1.msra.mxu0 %v303
    %305 = vmatprep.subr.mxu0 0.0
    %v306 = vand.u32 %v63, 4294901760
    %v307 = vsub.f32 %v63, %v306
    %v308 = vand.u32 %v307, 4294901760
    %v309 = vsub.f32 %v307, %v308
    %v310 = vand.u32 %v309, 4294901760
    %311 = vmatpush1.msra.mxu0 %v310
    %312 = vmatprep.subr.mxu0 0.0
    %313 = vmatpush2.msra.mxu0 0.0
    %314 = vmatprep.subr.mxu0 0.0
    %315 = vmatpush2.msra.mxu0 0.0
    %316 = vmatprep.subr.mxu0 0.0
    %317 = vmatpush2.msra.mxu0 0.0
    %318 = vmatprep.subr.mxu0 0.0
    %319 = vmatpush2.msra.mxu0 0.0
    %320 = vmatprep.subr.mxu0 0.0
    %321 = vmatpush2.msra.mxu0 0.0
    %322 = vmatprep.subr.mxu0 0.0
    %323 = vmatpush2.msra.mxu0 0.0
    %324 = vmatprep.subr.mxu0 0.0
    %325 = vmatpush2.msra.mxu0 0.0
    %326 = vmatprep.subr.mxu0 0.0
    %327 = vmatpush2.msra.mxu0 0.0
    %328 = vmatprep.subr.mxu0 0.0
    %329 = vmatpush2.msra.mxu0 0.0
    %330 = vmatprep.subr.mxu0 0.0
    %331 = vmatpush2.msra.mxu0 0.0
    %332 = vmatprep.subr.mxu0 0.0
    %333 = vmatpush2.msra.mxu0 0.0
    %334 = vmatprep.subr.mxu0 0.0
    %335 = vmatpush2.msra.mxu0 0.0
    %336 = vmatprep.subr.mxu0 0.0
    %337 = vmatpush2.msra.mxu0 0.0
    %338 = vmatprep.subr.mxu0 0.0
    %339 = vmatpush2.msra.mxu0 0.0
    %340 = vmatprep.subr.mxu0 0.0
    %341 = vmatpush2.msra.mxu0 0.0
    %342 = vmatprep.subr.mxu0 0.0
    %343 = vmatpush2.msra.mxu0 0.0
    %344 = vmatprep.mubr.f32.mxu0 0.0
    %v345 = vand.u32 %v59, 4294901760
    %346 = vmatmul.mubr.f32.gmra.mxu0 %v345
    %v347 = vpop.f32.mrf.mxu0
    %v348 = vadd.f32 %v167, %v347
    %v349 = vpop.f32.mrf.mxu0
    %350 = vmatprep.mubr.f32.mxu0 0.0
    %v351 = vand.u32 %v60, 4294901760
    %352 = vmatmul.mubr.f32.gmra.mxu0 %v351
    %v353 = vpop.f32.mrf.mxu0
    %v354 = vadd.f32 %v177, %v353
    %v355 = vpop.f32.mrf.mxu0
    %356 = vmatprep.mubr.f32.mxu0 0.0
    %v357 = vand.u32 %v61, 4294901760
    %358 = vmatmul.mubr.f32.gmra.mxu0 %v357
    %v359 = vpop.f32.mrf.mxu0
    %v360 = vadd.f32 %v187, %v359
    %v361 = vpop.f32.mrf.mxu0
    %362 = vmatprep.mubr.f32.mxu0 0.0
    %v363 = vand.u32 %v62, 4294901760
    %364 = vmatmul.mubr.f32.gmra.mxu0 %v363
    %v365 = vpop.f32.mrf.mxu0
    %v366 = vadd.f32 %v197, %v365
    %v367 = vpop.f32.mrf.mxu0
    %368 = vdwg.mxu0
    %369 = vmatprep.subr.mxu0 0.0
    %v370 = vand.u32 %v78, 4294901760
    %v371 = vsub.f32 %v78, %v370
    %372 = vmatpush1.msra.mxu0 %v371
    %373 = vmatprep.subr.mxu0 0.0
    %v374 = vand.u32 %v77, 4294901760
    %v375 = vsub.f32 %v77, %v374
    %376 = vmatpush1.msra.mxu0 %v375
    %377 = vmatprep.subr.mxu0 0.0
    %v378 = vand.u32 %v76, 4294901760
    %v379 = vsub.f32 %v76, %v378
    %380 = vmatpush1.msra.mxu0 %v379
    %381 = vmatprep.subr.mxu0 0.0
    %v382 = vand.u32 %v75, 4294901760
    %v383 = vsub.f32 %v75, %v382
    %384 = vmatpush1.msra.mxu0 %v383
    %385 = vmatprep.subr.mxu0 0.0
    %v386 = vand.u32 %v74, 4294901760
    %v387 = vsub.f32 %v74, %v386
    %388 = vmatpush1.msra.mxu0 %v387
    %389 = vmatprep.subr.mxu0 0.0
    %v390 = vand.u32 %v73, 4294901760
    %v391 = vsub.f32 %v73, %v390
    %392 = vmatpush1.msra.mxu0 %v391
    %393 = vmatprep.subr.mxu0 0.0
    %v394 = vand.u32 %v72, 4294901760
    %v395 = vsub.f32 %v72, %v394
    %396 = vmatpush1.msra.mxu0 %v395
    %397 = vmatprep.subr.mxu0 0.0
    %v398 = vand.u32 %v71, 4294901760
    %v399 = vsub.f32 %v71, %v398
    %400 = vmatpush1.msra.mxu0 %v399
    %401 = vmatprep.subr.mxu0 0.0
    %v402 = vand.u32 %v70, 4294901760
    %v403 = vsub.f32 %v70, %v402
    %404 = vmatpush1.msra.mxu0 %v403
    %405 = vmatprep.subr.mxu0 0.0
    %v406 = vand.u32 %v69, 4294901760
    %v407 = vsub.f32 %v69, %v406
    %408 = vmatpush1.msra.mxu0 %v407
    %409 = vmatprep.subr.mxu0 0.0
    %v410 = vand.u32 %v68, 4294901760
    %v411 = vsub.f32 %v68, %v410
    %412 = vmatpush1.msra.mxu0 %v411
    %413 = vmatprep.subr.mxu0 0.0
    %v414 = vand.u32 %v67, 4294901760
    %v415 = vsub.f32 %v67, %v414
    %416 = vmatpush1.msra.mxu0 %v415
    %417 = vmatprep.subr.mxu0 0.0
    %v418 = vand.u32 %v66, 4294901760
    %v419 = vsub.f32 %v66, %v418
    %420 = vmatpush1.msra.mxu0 %v419
    %421 = vmatprep.subr.mxu0 0.0
    %v422 = vand.u32 %v65, 4294901760
    %v423 = vsub.f32 %v65, %v422
    %424 = vmatpush1.msra.mxu0 %v423
    %425 = vmatprep.subr.mxu0 0.0
    %v426 = vand.u32 %v64, 4294901760
    %v427 = vsub.f32 %v64, %v426
    %428 = vmatpush1.msra.mxu0 %v427
    %429 = vmatprep.subr.mxu0 0.0
    %v430 = vand.u32 %v63, 4294901760
    %v431 = vsub.f32 %v63, %v430
    %432 = vmatpush1.msra.mxu0 %v431
    %433 = vmatprep.subr.mxu0 0.0
    %434 = vmatpush2.msra.mxu0 0.0
    %435 = vmatprep.subr.mxu0 0.0
    %436 = vmatpush2.msra.mxu0 0.0
    %437 = vmatprep.subr.mxu0 0.0
    %438 = vmatpush2.msra.mxu0 0.0
    %439 = vmatprep.subr.mxu0 0.0
    %440 = vmatpush2.msra.mxu0 0.0
    %441 = vmatprep.subr.mxu0 0.0
    %442 = vmatpush2.msra.mxu0 0.0
    %443 = vmatprep.subr.mxu0 0.0
    %444 = vmatpush2.msra.mxu0 0.0
    %445 = vmatprep.subr.mxu0 0.0
    %446 = vmatpush2.msra.mxu0 0.0
    %447 = vmatprep.subr.mxu0 0.0
    %448 = vmatpush2.msra.mxu0 0.0
    %449 = vmatprep.subr.mxu0 0.0
    %450 = vmatpush2.msra.mxu0 0.0
    %451 = vmatprep.subr.mxu0 0.0
    %452 = vmatpush2.msra.mxu0 0.0
    %453 = vmatprep.subr.mxu0 0.0
    %454 = vmatpush2.msra.mxu0 0.0
    %455 = vmatprep.subr.mxu0 0.0
    %456 = vmatpush2.msra.mxu0 0.0
    %457 = vmatprep.subr.mxu0 0.0
    %458 = vmatpush2.msra.mxu0 0.0
    %459 = vmatprep.subr.mxu0 0.0
    %460 = vmatpush2.msra.mxu0 0.0
    %461 = vmatprep.subr.mxu0 0.0
    %462 = vmatpush2.msra.mxu0 0.0
    %463 = vmatprep.subr.mxu0 0.0
    %464 = vmatpush2.msra.mxu0 0.0
    %465 = vmatprep.mubr.f32.mxu0 0.0
    %v466 = vand.u32 %v59, 4294901760
    %v467 = vsub.f32 %v59, %v466
    %468 = vmatmul.mubr.f32.gmra.mxu0 %v467
    %v469 = vpop.f32.mrf.mxu0
    %v470 = vadd.f32 %v348, %v469
    %v471 = vpop.f32.mrf.mxu0
    %472 = vmatprep.mubr.f32.mxu0 0.0
    %v473 = vand.u32 %v60, 4294901760
    %v474 = vsub.f32 %v60, %v473
    %475 = vmatmul.mubr.f32.gmra.mxu0 %v474
    %v476 = vpop.f32.mrf.mxu0
    %v477 = vadd.f32 %v354, %v476
    %v478 = vpop.f32.mrf.mxu0
    %479 = vmatprep.mubr.f32.mxu0 0.0
    %v480 = vand.u32 %v61, 4294901760
    %v481 = vsub.f32 %v61, %v480
    %482 = vmatmul.mubr.f32.gmra.mxu0 %v481
    %v483 = vpop.f32.mrf.mxu0
    %v484 = vadd.f32 %v360, %v483
    %v485 = vpop.f32.mrf.mxu0
    %486 = vmatprep.mubr.f32.mxu0 0.0
    %v487 = vand.u32 %v62, 4294901760
    %v488 = vsub.f32 %v62, %v487
    %489 = vmatmul.mubr.f32.gmra.mxu0 %v488
    %v490 = vpop.f32.mrf.mxu0
    %v491 = vadd.f32 %v366, %v490
    %v492 = vpop.f32.mrf.mxu0
    %493 = vdwg.mxu0
    %494 = vmatprep.subr.mxu0 0.0
    %v495 = vand.u32 %v78, 4294901760
    %496 = vmatpush1.msra.mxu0 %v495
    %497 = vmatprep.subr.mxu0 0.0
    %v498 = vand.u32 %v77, 4294901760
    %499 = vmatpush1.msra.mxu0 %v498
    %500 = vmatprep.subr.mxu0 0.0
    %v501 = vand.u32 %v76, 4294901760
    %502 = vmatpush1.msra.mxu0 %v501
    %503 = vmatprep.subr.mxu0 0.0
    %v504 = vand.u32 %v75, 4294901760
    %505 = vmatpush1.msra.mxu0 %v504
    %506 = vmatprep.subr.mxu0 0.0
    %v507 = vand.u32 %v74, 4294901760
    %508 = vmatpush1.msra.mxu0 %v507
    %509 = vmatprep.subr.mxu0 0.0
    %v510 = vand.u32 %v73, 4294901760
    %511 = vmatpush1.msra.mxu0 %v510
    %512 = vmatprep.subr.mxu0 0.0
    %v513 = vand.u32 %v72, 4294901760
    %514 = vmatpush1.msra.mxu0 %v513
    %515 = vmatprep.subr.mxu0 0.0
    %v516 = vand.u32 %v71, 4294901760
    %517 = vmatpush1.msra.mxu0 %v516
    %518 = vmatprep.subr.mxu0 0.0
    %v519 = vand.u32 %v70, 4294901760
    %520 = vmatpush1.msra.mxu0 %v519
    %521 = vmatprep.subr.mxu0 0.0
    %v522 = vand.u32 %v69, 4294901760
    %523 = vmatpush1.msra.mxu0 %v522
    %524 = vmatprep.subr.mxu0 0.0
    %v525 = vand.u32 %v68, 4294901760
    %526 = vmatpush1.msra.mxu0 %v525
    %527 = vmatprep.subr.mxu0 0.0
    %v528 = vand.u32 %v67, 4294901760
    %529 = vmatpush1.msra.mxu0 %v528
    %530 = vmatprep.subr.mxu0 0.0
    %v531 = vand.u32 %v66, 4294901760
    %532 = vmatpush1.msra.mxu0 %v531
    %533 = vmatprep.subr.mxu0 0.0
    %v534 = vand.u32 %v65, 4294901760
    %535 = vmatpush1.msra.mxu0 %v534
    %536 = vmatprep.subr.mxu0 0.0
    %v537 = vand.u32 %v64, 4294901760
    %538 = vmatpush1.msra.mxu0 %v537
    %539 = vmatprep.subr.mxu0 0.0
    %v540 = vand.u32 %v63, 4294901760
    %541 = vmatpush1.msra.mxu0 %v540
    %542 = vmatprep.subr.mxu0 0.0
    %543 = vmatpush2.msra.mxu0 0.0
    %544 = vmatprep.subr.mxu0 0.0
    %545 = vmatpush2.msra.mxu0 0.0
    %546 = vmatprep.subr.mxu0 0.0
    %547 = vmatpush2.msra.mxu0 0.0
    %548 = vmatprep.subr.mxu0 0.0
    %549 = vmatpush2.msra.mxu0 0.0
    %550 = vmatprep.subr.mxu0 0.0
    %551 = vmatpush2.msra.mxu0 0.0
    %552 = vmatprep.subr.mxu0 0.0
    %553 = vmatpush2.msra.mxu0 0.0
    %554 = vmatprep.subr.mxu0 0.0
    %555 = vmatpush2.msra.mxu0 0.0
    %556 = vmatprep.subr.mxu0 0.0
    %557 = vmatpush2.msra.mxu0 0.0
    %558 = vmatprep.subr.mxu0 0.0
    %559 = vmatpush2.msra.mxu0 0.0
    %560 = vmatprep.subr.mxu0 0.0
    %561 = vmatpush2.msra.mxu0 0.0
    %562 = vmatprep.subr.mxu0 0.0
    %563 = vmatpush2.msra.mxu0 0.0
    %564 = vmatprep.subr.mxu0 0.0
    %565 = vmatpush2.msra.mxu0 0.0
    %566 = vmatprep.subr.mxu0 0.0
    %567 = vmatpush2.msra.mxu0 0.0
    %568 = vmatprep.subr.mxu0 0.0
    %569 = vmatpush2.msra.mxu0 0.0
    %570 = vmatprep.subr.mxu0 0.0
    %571 = vmatpush2.msra.mxu0 0.0
    %572 = vmatprep.subr.mxu0 0.0
    %573 = vmatpush2.msra.mxu0 0.0
    %574 = vmatprep.mubr.f32.mxu0 0.0
    %v575 = vand.u32 %v59, 4294901760
    %v576 = vsub.f32 %v59, %v575
    %v577 = vand.u32 %v576, 4294901760
    %578 = vmatmul.mubr.f32.gmra.mxu0 %v577
    %v579 = vpop.f32.mrf.mxu0
    %v580 = vadd.f32 %v470, %v579
    %v581 = vpop.f32.mrf.mxu0
    %582 = vmatprep.mubr.f32.mxu0 0.0
    %v583 = vand.u32 %v60, 4294901760
    %v584 = vsub.f32 %v60, %v583
    %v585 = vand.u32 %v584, 4294901760
    %586 = vmatmul.mubr.f32.gmra.mxu0 %v585
    %v587 = vpop.f32.mrf.mxu0
    %v588 = vadd.f32 %v477, %v587
    %v589 = vpop.f32.mrf.mxu0
    %590 = vmatprep.mubr.f32.mxu0 0.0
    %v591 = vand.u32 %v61, 4294901760
    %v592 = vsub.f32 %v61, %v591
    %v593 = vand.u32 %v592, 4294901760
    %594 = vmatmul.mubr.f32.gmra.mxu0 %v593
    %v595 = vpop.f32.mrf.mxu0
    %v596 = vadd.f32 %v484, %v595
    %v597 = vpop.f32.mrf.mxu0
    %598 = vmatprep.mubr.f32.mxu0 0.0
    %v599 = vand.u32 %v62, 4294901760
    %v600 = vsub.f32 %v62, %v599
    %v601 = vand.u32 %v600, 4294901760
    %602 = vmatmul.mubr.f32.gmra.mxu0 %v601
    %v603 = vpop.f32.mrf.mxu0
    %v604 = vadd.f32 %v491, %v603
    %v605 = vpop.f32.mrf.mxu0
    %606 = vdwg.mxu0
    %607 = vmatprep.subr.mxu0 0.0
    %v608 = vand.u32 %v78, 4294901760
    %v609 = vsub.f32 %v78, %v608
    %v610 = vand.u32 %v609, 4294901760
    %611 = vmatpush1.msra.mxu0 %v610
    %612 = vmatprep.subr.mxu0 0.0
    %v613 = vand.u32 %v77, 4294901760
    %v614 = vsub.f32 %v77, %v613
    %v615 = vand.u32 %v614, 4294901760
    %616 = vmatpush1.msra.mxu0 %v615
    %617 = vmatprep.subr.mxu0 0.0
    %v618 = vand.u32 %v76, 4294901760
    %v619 = vsub.f32 %v76, %v618
    %v620 = vand.u32 %v619, 4294901760
    %621 = vmatpush1.msra.mxu0 %v620
    %622 = vmatprep.subr.mxu0 0.0
    %v623 = vand.u32 %v75, 4294901760
    %v624 = vsub.f32 %v75, %v623
    %v625 = vand.u32 %v624, 4294901760
    %626 = vmatpush1.msra.mxu0 %v625
    %627 = vmatprep.subr.mxu0 0.0
    %v628 = vand.u32 %v74, 4294901760
    %v629 = vsub.f32 %v74, %v628
    %v630 = vand.u32 %v629, 4294901760
    %631 = vmatpush1.msra.mxu0 %v630
    %632 = vmatprep.subr.mxu0 0.0
    %v633 = vand.u32 %v73, 4294901760
    %v634 = vsub.f32 %v73, %v633
    %v635 = vand.u32 %v634, 4294901760
    %636 = vmatpush1.msra.mxu0 %v635
    %637 = vmatprep.subr.mxu0 0.0
    %v638 = vand.u32 %v72, 4294901760
    %v639 = vsub.f32 %v72, %v638
    %v640 = vand.u32 %v639, 4294901760
    %641 = vmatpush1.msra.mxu0 %v640
    %642 = vmatprep.subr.mxu0 0.0
    %v643 = vand.u32 %v71, 4294901760
    %v644 = vsub.f32 %v71, %v643
    %v645 = vand.u32 %v644, 4294901760
    %646 = vmatpush1.msra.mxu0 %v645
    %647 = vmatprep.subr.mxu0 0.0
    %v648 = vand.u32 %v70, 4294901760
    %v649 = vsub.f32 %v70, %v648
    %v650 = vand.u32 %v649, 4294901760
    %651 = vmatpush1.msra.mxu0 %v650
    %652 = vmatprep.subr.mxu0 0.0
    %v653 = vand.u32 %v69, 4294901760
    %v654 = vsub.f32 %v69, %v653
    %v655 = vand.u32 %v654, 4294901760
    %656 = vmatpush1.msra.mxu0 %v655
    %657 = vmatprep.subr.mxu0 0.0
    %v658 = vand.u32 %v68, 4294901760
    %v659 = vsub.f32 %v68, %v658
    %v660 = vand.u32 %v659, 4294901760
    %661 = vmatpush1.msra.mxu0 %v660
    %662 = vmatprep.subr.mxu0 0.0
    %v663 = vand.u32 %v67, 4294901760
    %v664 = vsub.f32 %v67, %v663
    %v665 = vand.u32 %v664, 4294901760
    %666 = vmatpush1.msra.mxu0 %v665
    %667 = vmatprep.subr.mxu0 0.0
    %v668 = vand.u32 %v66, 4294901760
    %v669 = vsub.f32 %v66, %v668
    %v670 = vand.u32 %v669, 4294901760
    %671 = vmatpush1.msra.mxu0 %v670
    %672 = vmatprep.subr.mxu0 0.0
    %v673 = vand.u32 %v65, 4294901760
    %v674 = vsub.f32 %v65, %v673
    %v675 = vand.u32 %v674, 4294901760
    %676 = vmatpush1.msra.mxu0 %v675
    %677 = vmatprep.subr.mxu0 0.0
    %v678 = vand.u32 %v64, 4294901760
    %v679 = vsub.f32 %v64, %v678
    %v680 = vand.u32 %v679, 4294901760
    %681 = vmatpush1.msra.mxu0 %v680
    %682 = vmatprep.subr.mxu0 0.0
    %v683 = vand.u32 %v63, 4294901760
    %v684 = vsub.f32 %v63, %v683
    %v685 = vand.u32 %v684, 4294901760
    %686 = vmatpush1.msra.mxu0 %v685
    %687 = vmatprep.subr.mxu0 0.0
    %688 = vmatpush2.msra.mxu0 0.0
    %689 = vmatprep.subr.mxu0 0.0
    %690 = vmatpush2.msra.mxu0 0.0
    %691 = vmatprep.subr.mxu0 0.0
    %692 = vmatpush2.msra.mxu0 0.0
    %693 = vmatprep.subr.mxu0 0.0
    %694 = vmatpush2.msra.mxu0 0.0
    %695 = vmatprep.subr.mxu0 0.0
    %696 = vmatpush2.msra.mxu0 0.0
    %697 = vmatprep.subr.mxu0 0.0
    %698 = vmatpush2.msra.mxu0 0.0
    %699 = vmatprep.subr.mxu0 0.0
    %700 = vmatpush2.msra.mxu0 0.0
    %701 = vmatprep.subr.mxu0 0.0
    %702 = vmatpush2.msra.mxu0 0.0
    %703 = vmatprep.subr.mxu0 0.0
    %704 = vmatpush2.msra.mxu0 0.0
    %705 = vmatprep.subr.mxu0 0.0
    %706 = vmatpush2.msra.mxu0 0.0
    %707 = vmatprep.subr.mxu0 0.0
    %708 = vmatpush2.msra.mxu0 0.0
    %709 = vmatprep.subr.mxu0 0.0
    %710 = vmatpush2.msra.mxu0 0.0
    %711 = vmatprep.subr.mxu0 0.0
    %712 = vmatpush2.msra.mxu0 0.0
    %713 = vmatprep.subr.mxu0 0.0
    %714 = vmatpush2.msra.mxu0 0.0
    %715 = vmatprep.subr.mxu0 0.0
    %716 = vmatpush2.msra.mxu0 0.0
    %717 = vmatprep.subr.mxu0 0.0
    %718 = vmatpush2.msra.mxu0 0.0
    %719 = vmatprep.mubr.f32.mxu0 0.0
    %v720 = vand.u32 %v59, 4294901760
    %721 = vmatmul.mubr.f32.gmra.mxu0 %v720
    %v722 = vpop.f32.mrf.mxu0
    %v723 = vadd.f32 %v580, %v722
    %v724 = vpop.f32.mrf.mxu0
    %725 = vmatprep.mubr.f32.mxu0 0.0
    %v726 = vand.u32 %v60, 4294901760
    %727 = vmatmul.mubr.f32.gmra.mxu0 %v726
    %v728 = vpop.f32.mrf.mxu0
    %v729 = vadd.f32 %v588, %v728
    %v730 = vpop.f32.mrf.mxu0
    %731 = vmatprep.mubr.f32.mxu0 0.0
    %v732 = vand.u32 %v61, 4294901760
    %733 = vmatmul.mubr.f32.gmra.mxu0 %v732
    %v734 = vpop.f32.mrf.mxu0
    %v735 = vadd.f32 %v596, %v734
    %v736 = vpop.f32.mrf.mxu0
    %737 = vmatprep.mubr.f32.mxu0 0.0
    %v738 = vand.u32 %v62, 4294901760
    %739 = vmatmul.mubr.f32.gmra.mxu0 %v738
    %v740 = vpop.f32.mrf.mxu0
    %v741 = vadd.f32 %v604, %v740
    %v742 = vpop.f32.mrf.mxu0
    %743 = vdwg.mxu0
    %744 = vmatprep.subr.mxu0 0.0
    %v745 = vand.u32 %v78, 4294901760
    %746 = vmatpush1.msra.mxu0 %v745
    %747 = vmatprep.subr.mxu0 0.0
    %v748 = vand.u32 %v77, 4294901760
    %749 = vmatpush1.msra.mxu0 %v748
    %750 = vmatprep.subr.mxu0 0.0
    %v751 = vand.u32 %v76, 4294901760
    %752 = vmatpush1.msra.mxu0 %v751
    %753 = vmatprep.subr.mxu0 0.0
    %v754 = vand.u32 %v75, 4294901760
    %755 = vmatpush1.msra.mxu0 %v754
    %756 = vmatprep.subr.mxu0 0.0
    %v757 = vand.u32 %v74, 4294901760
    %758 = vmatpush1.msra.mxu0 %v757
    %759 = vmatprep.subr.mxu0 0.0
    %v760 = vand.u32 %v73, 4294901760
    %761 = vmatpush1.msra.mxu0 %v760
    %762 = vmatprep.subr.mxu0 0.0
    %v763 = vand.u32 %v72, 4294901760
    %764 = vmatpush1.msra.mxu0 %v763
    %765 = vmatprep.subr.mxu0 0.0
    %v766 = vand.u32 %v71, 4294901760
    %767 = vmatpush1.msra.mxu0 %v766
    %768 = vmatprep.subr.mxu0 0.0
    %v769 = vand.u32 %v70, 4294901760
    %770 = vmatpush1.msra.mxu0 %v769
    %771 = vmatprep.subr.mxu0 0.0
    %v772 = vand.u32 %v69, 4294901760
    %773 = vmatpush1.msra.mxu0 %v772
    %774 = vmatprep.subr.mxu0 0.0
    %v775 = vand.u32 %v68, 4294901760
    %776 = vmatpush1.msra.mxu0 %v775
    %777 = vmatprep.subr.mxu0 0.0
    %v778 = vand.u32 %v67, 4294901760
    %779 = vmatpush1.msra.mxu0 %v778
    %780 = vmatprep.subr.mxu0 0.0
    %v781 = vand.u32 %v66, 4294901760
    %782 = vmatpush1.msra.mxu0 %v781
    %783 = vmatprep.subr.mxu0 0.0
    %v784 = vand.u32 %v65, 4294901760
    %785 = vmatpush1.msra.mxu0 %v784
    %786 = vmatprep.subr.mxu0 0.0
    %v787 = vand.u32 %v64, 4294901760
    %788 = vmatpush1.msra.mxu0 %v787
    %789 = vmatprep.subr.mxu0 0.0
    %v790 = vand.u32 %v63, 4294901760
    %791 = vmatpush1.msra.mxu0 %v790
    %792 = vmatprep.subr.mxu0 0.0
    %793 = vmatpush2.msra.mxu0 0.0
    %794 = vmatprep.subr.mxu0 0.0
    %795 = vmatpush2.msra.mxu0 0.0
    %796 = vmatprep.subr.mxu0 0.0
    %797 = vmatpush2.msra.mxu0 0.0
    %798 = vmatprep.subr.mxu0 0.0
    %799 = vmatpush2.msra.mxu0 0.0
    %800 = vmatprep.subr.mxu0 0.0
    %801 = vmatpush2.msra.mxu0 0.0
    %802 = vmatprep.subr.mxu0 0.0
    %803 = vmatpush2.msra.mxu0 0.0
    %804 = vmatprep.subr.mxu0 0.0
    %805 = vmatpush2.msra.mxu0 0.0
    %806 = vmatprep.subr.mxu0 0.0
    %807 = vmatpush2.msra.mxu0 0.0
    %808 = vmatprep.subr.mxu0 0.0
    %809 = vmatpush2.msra.mxu0 0.0
    %810 = vmatprep.subr.mxu0 0.0
    %811 = vmatpush2.msra.mxu0 0.0
    %812 = vmatprep.subr.mxu0 0.0
    %813 = vmatpush2.msra.mxu0 0.0
    %814 = vmatprep.subr.mxu0 0.0
    %815 = vmatpush2.msra.mxu0 0.0
    %816 = vmatprep.subr.mxu0 0.0
    %817 = vmatpush2.msra.mxu0 0.0
    %818 = vmatprep.subr.mxu0 0.0
    %819 = vmatpush2.msra.mxu0 0.0
    %820 = vmatprep.subr.mxu0 0.0
    %821 = vmatpush2.msra.mxu0 0.0
    %822 = vmatprep.subr.mxu0 0.0
    %823 = vmatpush2.msra.mxu0 0.0
    %824 = vmatprep.mubr.f32.mxu0 0.0
    %v825 = vand.u32 %v59, 4294901760
    %826 = vmatmul.mubr.f32.gmra.mxu0 %v825
    %v827 = vpop.f32.mrf.mxu0
    %v828 = vadd.f32 %v723, %v827
    %v829 = vpop.f32.mrf.mxu0
    %830 = vmatprep.mubr.f32.mxu0 0.0
    %v831 = vand.u32 %v60, 4294901760
    %832 = vmatmul.mubr.f32.gmra.mxu0 %v831
    %v833 = vpop.f32.mrf.mxu0
    %v834 = vadd.f32 %v729, %v833
    %v835 = vpop.f32.mrf.mxu0
    %836 = vmatprep.mubr.f32.mxu0 0.0
    %v837 = vand.u32 %v61, 4294901760
    %838 = vmatmul.mubr.f32.gmra.mxu0 %v837
    %v839 = vpop.f32.mrf.mxu0
    %v840 = vadd.f32 %v735, %v839
    %v841 = vpop.f32.mrf.mxu0
    %842 = vmatprep.mubr.f32.mxu0 0.0
    %v843 = vand.u32 %v62, 4294901760
    %844 = vmatmul.mubr.f32.gmra.mxu0 %v843
    %v845 = vpop.f32.mrf.mxu0
    %v846 = vadd.f32 %v741, %v845
    %v847 = vpop.f32.mrf.mxu0
    %848 = vdwg.mxu0
    %v849 = vld [vmem:[%s1] sm:$0x1]
    %v851 = vlaneseq
    %v852 = vshrl.u32 %v851, 7
    %v853 = vsub.s32 0, %v852
    %v854 = vrot.slane %v849, %v853
    %v856 = vadd.f32 %v828, %v854
    %v857 = vadd.f32 %v834, %v854
    %v858 = vadd.f32 %v840, %v854
    %v859 = vadd.f32 %v846, %v854
    %vm860 = vcmask 261120
    %861 = vst.msk [vmem:[#allocation7] sm:$0xff] %vm860, %v856
    %862 = vst.msk [vmem:[#allocation7 + $0x8] sm:$0xff] %vm860, %v857
    %863 = vst.msk [vmem:[#allocation7 + $0x10] sm:$0xff] %vm860, %v858
    %864 = vst.msk [vmem:[#allocation7 + $0x18] sm:$0xff] %vm860, %v859
    // Predicated region
    $region14: #{_patch_embed_forward.2} parent=1 // pred_check
      _
    $region15: #{_patch_embed_forward.2} parent=1 // pred_check_branch
      %866 = sbr.rel (0) target = $region17
    $region16: #{_patch_embed_forward.2} parent=1 // pred_region
      %s868 = ssub.s32 512, 512
      %869 = vsyncadd [#allocation8], %s868
      %s870 = sshll.u32 [#allocation7], 4
      %s871 = int_to_ptr.vmem [resolvable:$true] %s870
      %876 = dma.vmem_to_hbm [thread:$0]  %s871, 512, %s4, [#allocation8], 128, 128, 8
    $region17: #{_patch_embed_forward.2} parent=1 // pred_fallthru
      _
    // Predicated region
    $region18: #{_patch_embed_forward.2} parent=1 // pred_check
      _
    $region19: #{_patch_embed_forward.2} parent=1 // pred_check_branch
      %878 = sbr.rel (0) target = $region21
    $region20: #{_patch_embed_forward.2} parent=1 // pred_region
      %879 = dma.done [#allocation8], 512
    $region21: #{_patch_embed_forward.2} parent=1 // pred_fallthru
      _
    %880 = vsyncpa [#allocation8], 1

</llo_original>
